<compile_context>
chip_gen: v7x
topology: tpu7x:2x2x1
jax: 0.10.0
libtpu: 0.0.40
codegen_flags: <defaults>
</compile_context>

<pallas_src>
import math
import functools

import jax
import jax.numpy as jnp
from jax.experimental import pallas as pl
from jax.experimental.pallas import tpu as pltpu


def _round_up(x, m):
    return (x + m - 1) // m * m


# ---------------------------------------------------------------------------
# Pallas kernels (K-tiled: grid = (out_tiles, batch_tiles, k_tiles), k innermost)
# ---------------------------------------------------------------------------
def _linear_mu_kernel(x_ref, wmu_ref, bpack_ref, o_ref, acc_ref):
    """y = x @ weight_mu + bias_mu   (log=False path; weights pre-transposed, bf16)."""
    k = pl.program_id(2)

    @pl.when(k == 0)
    def _():
        acc_ref[...] = jnp.zeros_like(acc_ref)

    acc_ref[...] += jnp.dot(x_ref[...].astype(jnp.bfloat16), wmu_ref[...],
                            preferred_element_type=jnp.float32)

    @pl.when(k == pl.num_programs(2) - 1)
    def _():
        bias_mu = bpack_ref[0:1, :]                       # (1, tile_n) f32
        o_ref[...] = (acc_ref[...] + bias_mu).astype(o_ref.dtype)


def _linear_noisy_kernel(x_ref, wmu_ref, wsig_ref, eps_in_ref, bpack_ref,
                         o_ref, acc_ref):
    """y = x@Wmu + ((x*eps_in)@Wsig)*eps_out + (b_mu + b_sigma*eps_out)."""
    k = pl.program_id(2)

    @pl.when(k == 0)
    def _():
        acc_ref[...] = jnp.zeros_like(acc_ref)

    eps_out = bpack_ref[2:3, :]                           # (1, tile_n) f32
    x = x_ref[...]                                        # (tile_m, tile_k) f32
    # f32 VPU for the rank-1 input scaling; bf16 only at the MXU boundary.
    x_bf = x.astype(jnp.bfloat16)
    xs_bf = (x * eps_in_ref[...]).astype(jnp.bfloat16)

    y_mu = jnp.dot(x_bf, wmu_ref[...], preferred_element_type=jnp.float32)
    y_sig = jnp.dot(xs_bf, wsig_ref[...], preferred_element_type=jnp.float32)
    acc_ref[...] += y_mu + y_sig * eps_out

    @pl.when(k == pl.num_programs(2) - 1)
    def _():
        b = bpack_ref[0:1, :] + bpack_ref[1:2, :] * eps_out
        o_ref[...] = (acc_ref[...] + b).astype(o_ref.dtype)


# ---------------------------------------------------------------------------
# Tiling helpers
# ---------------------------------------------------------------------------
def _pick_tile_n(out_pad):
    # Prefer big lane-dense tiles, but keep >=2 output tiles when possible so
    # a "parallel" axis can feed both v7x TensorCores.
    for t in (512, 256, 128):
        if out_pad % t == 0 and out_pad // t >= 2:
            return t
    return min(out_pad, 512) if out_pad % 512 == 0 or out_pad <= 512 else 128


def _pick_tile_k(in_pad):
    if in_pad <= 1024:        # single K block -> weight-stationary across batch
        return in_pad
    for t in (512, 256, 128):
        if in_pad % t == 0:
            return t
    return 128


# ---------------------------------------------------------------------------
# Wrapper
# ---------------------------------------------------------------------------
@functools.partial(jax.jit, static_argnames=("out_features", "log"))
def noisy_linear_forward(x, dev, out_features, log=False):
    batch, in_f = x.shape
    in_pad, out_pad = dev["weight_mu_t"].shape

    batch_pad = _round_up(batch, 8)
    if batch_pad > 128:
        batch_pad = _round_up(batch, 128)
    tile_m = min(batch_pad, 128)
    tile_n = _pick_tile_n(out_pad)
    tile_k = _pick_tile_k(in_pad)

    x_p = jnp.pad(x, ((0, batch_pad - batch), (0, in_pad - in_f)))

    grid = (out_pad // tile_n, batch_pad // tile_m, in_pad // tile_k)
    x_spec = pl.BlockSpec((tile_m, tile_k), lambda j, i, k: (i, k))
    w_spec = pl.BlockSpec((tile_k, tile_n), lambda j, i, k: (k, j))
    eps_spec = pl.BlockSpec((1, tile_k), lambda j, i, k: (0, k))
    b_spec = pl.BlockSpec((3, tile_n), lambda j, i, k: (0, j))
    o_spec = pl.BlockSpec((tile_m, tile_n), lambda j, i, k: (i, j))
    out_shape = jax.ShapeDtypeStruct((batch_pad, out_pad), x.dtype)
    scratch = [pltpu.VMEM((tile_m, tile_n), jnp.float32)]

    n_w = 2 if log else 1
    # Double-buffered block footprint (+ accumulator scratch), with headroom.
    block_bytes = (
        2 * tile_m * tile_k * 4                # x
        + n_w * 2 * tile_k * tile_n * 2        # bf16 weight block(s)
        + 2 * tile_m * tile_n * 4              # output
        + 2 * 3 * tile_n * 4                   # bias pack
        + 2 * tile_k * 4                       # eps_in row
        + tile_m * tile_n * 4)                 # accumulator
    vmem_limit = int(min(max(2 * block_bytes, 8 * 1024 * 1024), 48 * 1024 * 1024))

    cparams = pltpu.CompilerParams(
        dimension_semantics=("parallel", "parallel", "arbitrary"),
        vmem_limit_bytes=vmem_limit)

    cost = pl.CostEstimate(
        flops=2 * n_w * batch_pad * in_pad * out_pad,
        transcendentals=0,
        bytes_accessed=(n_w * in_pad * out_pad * 2
                        + batch_pad * in_pad * 4
                        + batch_pad * out_pad * 4
                        + (3 * out_pad + in_pad) * 4))

    if log:
        y = pl.pallas_call(
            _linear_noisy_kernel,
            out_shape=out_shape,
            grid=grid,
            in_specs=[x_spec, w_spec, w_spec, eps_spec, b_spec],
            out_specs=o_spec,
            scratch_shapes=scratch,
            compiler_params=cparams,
            cost_estimate=cost,
        )(x_p, dev["weight_mu_t"], dev["weight_sigma_t"],
          dev["eps_in_row"], dev["bias_pack"])
    else:
        y = pl.pallas_call(
            _linear_mu_kernel,
            out_shape=out_shape,
            grid=grid,
            in_specs=[x_spec, w_spec, b_spec],
            out_specs=o_spec,
            scratch_shapes=scratch,
            compiler_params=cparams,
            cost_estimate=cost,
        )(x_p, dev["weight_mu_t"], dev["bias_pack"])

    return y[:batch, :out_features]


# ---------------------------------------------------------------------------
# Parameter / noise initialization (mirrors the PyTorch module) + device layout
# ---------------------------------------------------------------------------
def _scale_noise(key, size):
    x = jax.random.normal(key, (size,), dtype=jnp.float32)
    return jnp.sign(x) * jnp.sqrt(jnp.abs(x))


def init_noisy_linear(key, in_features, out_features, std_init=0.5):
    k_w, k_b, k_ein, k_eout = jax.random.split(key, 4)
    mu_range = 1.0 / math.sqrt(in_features)

    weight_mu = jax.random.uniform(
        k_w, (out_features, in_features), jnp.float32, -mu_range, mu_range)
    weight_sigma = jnp.full((out_features, in_features),
                            std_init / math.sqrt(in_features), jnp.float32)
    bias_mu = jax.random.uniform(
        k_b, (out_features,), jnp.float32, -mu_range, mu_range)
    bias_sigma = jnp.full((out_features,),
                          std_init / math.sqrt(out_features), jnp.float32)

    # Factorized noise: weight_epsilon == outer(eps_out, eps_in),
    # bias_epsilon == eps_out.  Only the two factor vectors are stored.
    eps_in = _scale_noise(k_ein, in_features)
    eps_out = _scale_noise(k_eout, out_features)

    return dict(weight_mu=weight_mu, weight_sigma=weight_sigma,
                bias_mu=bias_mu, bias_sigma=bias_sigma,
                eps_in=eps_in, eps_out=eps_out)


def prepare_noisy_linear(params):
    """One-time layout prep: transpose to (in,out), zero-pad to 128 lanes,
    store weights in bf16, keep vectors in f32, pack biases."""
    w_mu = params["weight_mu"]            # (out, in)
    w_sigma = params["weight_sigma"]
    out_f, in_f = w_mu.shape
    in_pad = _round_up(in_f, 128)
    out_pad = _round_up(out_f, 128)

    def pad_w(a):  # (out, in) -> (in_pad, out_pad), zero padded, transposed, bf16
        return jnp.pad(a, ((0, out_pad - out_f), (0, in_pad - in_f))).T.astype(jnp.bfloat16)

    def pad_v(v):
        return jnp.pad(v, (0, out_pad - out_f))

    dev = dict(
        weight_mu_t=pad_w(w_mu),
        weight_sigma_t=pad_w(w_sigma),
        eps_in_row=jnp.pad(params["eps_in"], (0, in_pad - in_f)).reshape(1, in_pad),
        bias_pack=jnp.stack([pad_v(params["bias_mu"]),
                             pad_v(params["bias_sigma"]),
                             pad_v(params["eps_out"])], axis=0),   # (3, out_pad) f32
    )
    return dev


# ---------------------------------------------------------------------------
# Main
# ---------------------------------------------------------------------------
if __name__ == "__main__":
    key = jax.random.PRNGKey(0)
    k_param, k_x = jax.random.split(key)

    batch, in_features, out_features = 8, 32, 64
    params = init_noisy_linear(k_param, in_features, out_features, std_init=0.5)
    dev = prepare_noisy_linear(params)
    x = jax.random.normal(k_x, (batch, in_features), dtype=jnp.float32)

    y_mu = noisy_linear_forward(x, dev, out_features, log=False)
    y_noisy = noisy_linear_forward(x, dev, out_features, log=True)
    jax.block_until_ready((y_mu, y_noisy))

    # Reference (plain f32 JAX, same math as the PyTorch module).
    ref_mu = x @ params["weight_mu"].T + params["bias_mu"]
    weight_eps = jnp.outer(params["eps_out"], params["eps_in"])
    w_noisy = params["weight_mu"] + params["weight_sigma"] * weight_eps
    b_noisy = params["bias_mu"] + params["bias_sigma"] * params["eps_out"]
    ref_noisy = x @ w_noisy.T + b_noisy

    assert y_mu.shape == (batch, out_features)
    assert y_noisy.shape == (batch, out_features)
    assert jnp.allclose(y_mu, ref_mu, rtol=2e-2, atol=2e-2)
    assert jnp.allclose(y_noisy, ref_noisy, rtol=2e-2, atol=2e-2)

    print("KERNEL_OK")
</pallas_src>

<mosaic_0001>
module attributes {stable_mosaic.version = 11 : i64} {
  func.func @_linear_mu_kernel(%arg0: i32, %arg1: i32, %arg2: i32, %arg3: memref<8x128xf32, #tpu.memory_space<vmem>>, %arg4: memref<128x128xbf16, #tpu.memory_space<vmem>>, %arg5: memref<3x128xf32, #tpu.memory_space<vmem>>, %arg6: memref<8x128xf32, #tpu.memory_space<vmem>>, %arg7: memref<8x128xf32, #tpu.memory_space<vmem>>) attributes {dimension_semantics = [#tpu.dimension_semantics<parallel>, #tpu.dimension_semantics<parallel>, #tpu.dimension_semantics<arbitrary>], iteration_bounds = array<i64: 1, 1, 1>, scalar_prefetch = 0 : i64, scratch_operands = 1 : i64, tpu.core_type = #tpu.core_type<tc>, window_params = [{transform_indices = @transform_0, window_bounds = array<i64: 8, 128>}, {transform_indices = @transform_1, window_bounds = array<i64: 128, 128>}, {transform_indices = @transform_2, window_bounds = array<i64: 3, 128>}, {transform_indices = @transform_3, window_bounds = array<i64: 8, 128>}]} {
    %c0_i32 = arith.constant 0 : i32
    %0 = arith.cmpi eq, %arg2, %c0_i32 : i32
    %1 = arith.extui %0 : i1 to i32
    %c0_i32_0 = arith.constant 0 : i32
    %2 = arith.cmpi ne, %1, %c0_i32_0 : i32
    scf.if %2 {
      %cst_10 = arith.constant 0.000000e+00 : f32
      %13 = vector.broadcast %cst_10 : f32 to vector<8x128xf32>
      %c0_11 = arith.constant 0 : index
      %c0_12 = arith.constant 0 : index
      %14 = vector.load %arg7[%c0_11, %c0_12] : memref<8x128xf32, #tpu.memory_space<vmem>>, vector<8x128xf32>
      tpu.vector_store %arg7[%c0_11, %c0_12], %13 {strides = array<i32>} : memref<8x128xf32, #tpu.memory_space<vmem>>, vector<8x128xf32>,
    } else {
    }
    %c0 = arith.constant 0 : index
    %c0_1 = arith.constant 0 : index
    %3 = vector.load %arg7[%c0, %c0_1] : memref<8x128xf32, #tpu.memory_space<vmem>>, vector<8x128xf32>
    %c0_2 = arith.constant 0 : index
    %c0_3 = arith.constant 0 : index
    %4 = vector.load %arg3[%c0_2, %c0_3] : memref<8x128xf32, #tpu.memory_space<vmem>>, vector<8x128xf32>
    %5 = arith.truncf %4 : vector<8x128xf32> to vector<8x128xbf16>
    %c0_4 = arith.constant 0 : index
    %c0_5 = arith.constant 0 : index
    %6 = vector.load %arg4[%c0_4, %c0_5] : memref<128x128xbf16, #tpu.memory_space<vmem>>, vector<128x128xbf16>
    %cst = arith.constant dense<0.000000e+00> : vector<8x128xf32>
    %7 = tpu.matmul %5, %6, %cst {dimension_numbers = #tpu.dot_dimension_numbers<[1], [0], [0], [1], [0, 0, 1, 1], [], []>} : vector<8x128xbf16>, vector<128x128xbf16>, vector<8x128xf32> -> vector<8x128xf32>
    %8 = arith.addf %3, %7 : vector<8x128xf32>
    %c0_6 = arith.constant 0 : index
    %c0_7 = arith.constant 0 : index
    %9 = vector.load %arg7[%c0_6, %c0_7] : memref<8x128xf32, #tpu.memory_space<vmem>>, vector<8x128xf32>
    tpu.vector_store %arg7[%c0_6, %c0_7], %8 {strides = array<i32>} : memref<8x128xf32, #tpu.memory_space<vmem>>, vector<8x128xf32>,
    %c0_i32_8 = arith.constant 0 : i32
    %10 = arith.cmpi eq, %arg2, %c0_i32_8 : i32
    %11 = arith.extui %10 : i1 to i32
    %c0_i32_9 = arith.constant 0 : i32
    %12 = arith.cmpi ne, %11, %c0_i32_9 : i32
    scf.if %12 {
      %c0_10 = arith.constant 0 : index
      %c0_11 = arith.constant 0 : index
      %13 = vector.load %arg5[%c0_10, %c0_11] : memref<3x128xf32, #tpu.memory_space<vmem>>, vector<1x128xf32>
      %c0_12 = arith.constant 0 : index
      %c0_13 = arith.constant 0 : index
      %14 = vector.load %arg7[%c0_12, %c0_13] : memref<8x128xf32, #tpu.memory_space<vmem>>, vector<8x128xf32>
      %15 = vector.broadcast %13 : vector<1x128xf32> to vector<8x128xf32>
      %16 = arith.addf %14, %15 : vector<8x128xf32>
      %c0_14 = arith.constant 0 : index
      %c0_15 = arith.constant 0 : index
      %17 = vector.load %arg6[%c0_14, %c0_15] : memref<8x128xf32, #tpu.memory_space<vmem>>, vector<8x128xf32>
      tpu.vector_store %arg6[%c0_14, %c0_15], %16 {strides = array<i32>} : memref<8x128xf32, #tpu.memory_space<vmem>>, vector<8x128xf32>,
    } else {
    }
    return
  }
  func.func @transform_0(%arg0: i32, %arg1: i32, %arg2: i32) -> (i32, i32) {
    %c0_i32 = arith.constant 0 : i32
    return %arg1, %arg2 : i32, i32
  }
  func.func @transform_1(%arg0: i32, %arg1: i32, %arg2: i32) -> (i32, i32) {
    %c0_i32 = arith.constant 0 : i32
    return %arg2, %arg0 : i32, i32
  }
  func.func @transform_2(%arg0: i32, %arg1: i32, %arg2: i32) -> (i32, i32) {
    %c0_i32 = arith.constant 0 : i32
    %c0_i32_0 = arith.constant 0 : i32
    return %c0_i32, %arg0 : i32, i32
  }
  func.func @transform_3(%arg0: i32, %arg1: i32, %arg2: i32) -> (i32, i32) {
    %c0_i32 = arith.constant 0 : i32
    return %arg1, %arg0 : i32, i32
  }
}

</mosaic_0001>

<llo_original>
// kernel: noisy_linear_forward.1
$region0: #{noisy_linear_forward.1}
  #allocation0 [shape = 'u32[]', space=smem, size = 0x4, offset = 0x4, fixed_abs, tag = 'smem constant byte address 0x4 - core index']
  #allocation1 [shape = 'u32[144,128]{1,0:T(1,128)}', space=vmem, size = 0x12000, scoped, tag = 'internal scratch']
  #allocation2 [shape = 'f32[8,128]{1,0:T(8,128)}', space=vmem, size = 0x1000, scoped, tag = 'scratch operand']
  %s0 = inlined_call_operand.vmem [shape: f32[8,128], index: 0, kind: input, shape index: {}]
  %s1 = inlined_call_operand.hbm [shape: bf16[128,128], index: 1, kind: input, shape index: {}]
  %s2 = inlined_call_operand.vmem [shape: f32[3,128], index: 2, kind: input, shape index: {}]
  %s3 = inlined_call_operand.hbm [shape: f32[8,128], index: 3, kind: output, shape index: {}]
  %s4 = sld [smem:[#allocation0]]
  $region34: #{noisy_linear_forward.1} parent=0
    _
  %s6 = ssub.s32 1, %s4
  %s7 = scalar_select 0, %s6, %s4
  $region1: #{noisy_linear_forward.1} parent=0
    #allocation3 [shape = 'u8[32768]{0}', space=vmem, size = 0x8000, scoped, tag = 'input window, operand 1, single buffered']
    #allocation4 [shape = 's32[1]{0}', space=sflag, size = 0x4, scoped, tag = 'scoped memory for noisy_linear_forward.1']
    #allocation5 [shape = 's32[1]{0}', space=sflag, size = 0x4, scoped, tag = 'scoped memory for noisy_linear_forward.1']
    #allocation6 [shape = 'u8[4096]{0}', space=vmem, size = 0x1000, scoped, tag = 'output window, operand 0, single buffered']
    %8 = vsyncpa [#allocation4], 0
    %9 = vsyncpa [#allocation5], 0
    // Predicated region
    $region2: #{noisy_linear_forward.1} parent=1 // pred_check
      _
    $region3: #{noisy_linear_forward.1} parent=1 // pred_check_branch
      %11 = sbr.rel (0) target = $region5
    $region4: #{noisy_linear_forward.1} parent=1 // pred_region
      _
    $region5: #{noisy_linear_forward.1} parent=1 // pred_fallthru
      _
    // Predicated region
    $region6: #{noisy_linear_forward.1} parent=1 // pred_check
      _
    $region7: #{noisy_linear_forward.1} parent=1 // pred_check_branch
      %13 = sbr.rel (0) target = $region9
    $region8: #{noisy_linear_forward.1} parent=1 // pred_region
      %s15 = ssub.s32 1024, 1024
      %16 = vsyncadd [#allocation4], %s15
      %s17 = sshll.u32 [#allocation3], 4
      %s18 = int_to_ptr.vmem [resolvable:$true] %s17
      %23 = dma.hbm_to_vmem [thread:$0]  %s1, 1024, %s18, [#allocation4], 64, 64, 4
    $region9: #{noisy_linear_forward.1} parent=1 // pred_fallthru
      _
    // Predicated region
    $region10: #{noisy_linear_forward.1} parent=1 // pred_check
      _
    $region11: #{noisy_linear_forward.1} parent=1 // pred_check_branch
      %25 = sbr.rel (0) target = $region13
    $region12: #{noisy_linear_forward.1} parent=1 // pred_region
      _
    $region13: #{noisy_linear_forward.1} parent=1 // pred_fallthru
      _
    // Predicated region
    $region14: #{noisy_linear_forward.1} parent=1 // pred_check
      _
    $region15: #{noisy_linear_forward.1} parent=1 // pred_check_branch
      %27 = sbr.rel (0) target = $region17
    $region16: #{noisy_linear_forward.1} parent=1 // pred_region
      %28 = dma.done [#allocation4], 1024
    $region17: #{noisy_linear_forward.1} parent=1 // pred_fallthru
      _
    %p30 = scmp.eq.s32.totalorder 0, 0
    // Predicated region
    $region18: #{noisy_linear_forward.1} parent=1 // pred_check
      %p31 = pneg %p30
    $region19: #{noisy_linear_forward.1} parent=1 // pred_check_branch
      %33 = sbr.rel (%p31) target = $region21
    $region20: #{noisy_linear_forward.1} parent=1 // pred_region
      %34 = vst [vmem:[#allocation2] sm:$0xff] 0.0
    $region21: #{noisy_linear_forward.1} parent=1 // pred_fallthru
      _
    %v35 = vld [vmem:[#allocation2] sm:$0xff]
    %v36 = vld [vmem:[%s0] sm:$0xff]
    %v37 = vpack.c.bf16 %v36, %v36
    %v38 = vld [vmem:[#allocation3] sm:$0xf]
    %v39 = vld [vmem:[#allocation3 + $0x4] sm:$0xf]
    %v40 = vld [vmem:[#allocation3 + $0x8] sm:$0xf]
    %v41 = vld [vmem:[#allocation3 + $0xc] sm:$0xf]
    %v42 = vld [vmem:[#allocation3 + $0x10] sm:$0xf]
    %v43 = vld [vmem:[#allocation3 + $0x14] sm:$0xf]
    %v44 = vld [vmem:[#allocation3 + $0x18] sm:$0xf]
    %v45 = vld [vmem:[#allocation3 + $0x1c] sm:$0xf]
    %v46 = vld [vmem:[#allocation3 + $0x20] sm:$0xf]
    %v47 = vld [vmem:[#allocation3 + $0x24] sm:$0xf]
    %v48 = vld [vmem:[#allocation3 + $0x28] sm:$0xf]
    %v49 = vld [vmem:[#allocation3 + $0x2c] sm:$0xf]
    %v50 = vld [vmem:[#allocation3 + $0x30] sm:$0xf]
    %v51 = vld [vmem:[#allocation3 + $0x34] sm:$0xf]
    %v52 = vld [vmem:[#allocation3 + $0x38] sm:$0xf]
    %v53 = vld [vmem:[#allocation3 + $0x3c] sm:$0xf]
    %v70 = vunpack.c.l.b16 %v38
    %v71 = vunpack.c.l.b16 %v39
    %v72 = vunpack.c.l.b16 %v40
    %v73 = vunpack.c.l.b16 %v41
    %v74 = vunpack.c.l.b16 %v42
    %v75 = vunpack.c.l.b16 %v43
    %v76 = vunpack.c.l.b16 %v44
    %v77 = vunpack.c.l.b16 %v45
    %v78 = vunpack.c.l.b16 %v46
    %v79 = vunpack.c.l.b16 %v47
    %v80 = vunpack.c.l.b16 %v48
    %v81 = vunpack.c.l.b16 %v49
    %v82 = vunpack.c.l.b16 %v50
    %v83 = vunpack.c.l.b16 %v51
    %v84 = vunpack.c.l.b16 %v52
    %v85 = vunpack.c.l.b16 %v53
    %v86 = vpack.c.b16 %v71, %v70
    %v87 = vpack.c.b16 %v73, %v72
    %v88 = vpack.c.b16 %v75, %v74
    %v89 = vpack.c.b16 %v77, %v76
    %v90 = vpack.c.b16 %v79, %v78
    %v91 = vpack.c.b16 %v81, %v80
    %v92 = vpack.c.b16 %v83, %v82
    %v93 = vpack.c.b16 %v85, %v84
    %102 = vmatprep.subr.bf16.mxu0 0
    %103 = vmatpush1.bf16.msra.mxu0 %v86
    %104 = vmatprep.subr.bf16.mxu0 0
    %105 = vmatpush1.bf16.msra.mxu0 %v87
    %106 = vmatprep.subr.bf16.mxu0 0
    %107 = vmatpush1.bf16.msra.mxu0 %v88
    %108 = vmatprep.subr.bf16.mxu0 0
    %109 = vmatpush1.bf16.msra.mxu0 %v89
    %110 = vmatprep.subr.bf16.mxu0 0
    %111 = vmatpush1.bf16.msra.mxu0 %v90
    %112 = vmatprep.subr.bf16.mxu0 0
    %113 = vmatpush1.bf16.msra.mxu0 %v91
    %114 = vmatprep.subr.bf16.mxu0 0
    %115 = vmatpush1.bf16.msra.mxu0 %v92
    %116 = vmatprep.subr.bf16.mxu0 0
    %117 = vmatpush1.bf16.msra.mxu0 %v93
    %118 = vmatprep.subr.bf16.mxu0 0
    %119 = vmatpush1.bf16.msra.mxu0 0
    %120 = vmatprep.subr.bf16.mxu0 0
    %121 = vmatpush1.bf16.msra.mxu0 0
    %122 = vmatprep.subr.bf16.mxu0 0
    %123 = vmatpush1.bf16.msra.mxu0 0
    %124 = vmatprep.subr.bf16.mxu0 0
    %125 = vmatpush1.bf16.msra.mxu0 0
    %126 = vmatprep.subr.bf16.mxu0 0
    %127 = vmatpush1.bf16.msra.mxu0 0
    %128 = vmatprep.subr.bf16.mxu0 0
    %129 = vmatpush1.bf16.msra.mxu0 0
    %130 = vmatprep.subr.bf16.mxu0 0
    %131 = vmatpush1.bf16.msra.mxu0 0
    %132 = vmatprep.subr.bf16.mxu0 0
    %133 = vmatpush1.bf16.msra.mxu0 0
    %134 = vmatprep.mubr.bf16.mxu0 0
    %135 = vmatmul.mubr.bf16.gmra.mrb[0].mxu0 %v37
    %v136 = vpop.f32.mrb[0].mxu0
    %v137 = vadd.f32 0.0, %v136
    %v138 = vpop.f32.mrb[0].mxu0
    %v139 = vpop.f32.mrb[0].mxu0
    %v140 = vpop.f32.mrb[0].mxu0
    %141 = vdwg.mxu0
    %v142 = vadd.f32 %v35, %v137
    %143 = vst [vmem:[#allocation2] sm:$0xff] %v142
    // Predicated region
    $region22: #{noisy_linear_forward.1} parent=1 // pred_check
      %p144 = pneg %p30
    $region23: #{noisy_linear_forward.1} parent=1 // pred_check_branch
      %146 = sbr.rel (%p144) target = $region25
    $region24: #{noisy_linear_forward.1} parent=1 // pred_region
      %v147 = vld [vmem:[%s2] sm:$0x1]
      %v148 = vld [vmem:[#allocation2] sm:$0xff]
      %v149 = vlaneseq
      %v150 = vshrl.u32 %v149, 7
      %v151 = vsub.s32 0, %v150
      %v152 = vrot.slane %v147, %v151
      %v153 = vadd.f32 %v148, %v152
      %154 = vst [vmem:[#allocation6] sm:$0xff] %v153
    $region25: #{noisy_linear_forward.1} parent=1 // pred_fallthru
      _
    // Predicated region
    $region26: #{noisy_linear_forward.1} parent=1 // pred_check
      _
    $region27: #{noisy_linear_forward.1} parent=1 // pred_check_branch
      %156 = sbr.rel (0) target = $region29
    $region28: #{noisy_linear_forward.1} parent=1 // pred_region
      %s158 = ssub.s32 128, 128
      %159 = vsyncadd [#allocation5], %s158
      %s161 = sshll.u32 [#allocation6], 4
      %s162 = int_to_ptr.vmem [resolvable:$true] %s161
      %164 = dma.vmem_to_hbm [thread:$0]  %s162, 128, %s3, [#allocation5]
    $region29: #{noisy_linear_forward.1} parent=1 // pred_fallthru
      _
    // Predicated region
    $region30: #{noisy_linear_forward.1} parent=1 // pred_check
      _
    $region31: #{noisy_linear_forward.1} parent=1 // pred_check_branch
      %166 = sbr.rel (0) target = $region33
    $region32: #{noisy_linear_forward.1} parent=1 // pred_region
      %167 = dma.done [#allocation5], 128
    $region33: #{noisy_linear_forward.1} parent=1 // pred_fallthru
      _
    %168 = vsyncpa [#allocation4], 1
    %169 = vsyncpa [#allocation5], 1

</llo_original>
